<compile_context>
chip_gen: v6e
topology: v6e:2x2x1
jax: 0.10.0
libtpu: 0.0.40
codegen_flags: <defaults>
</compile_context>

<pallas_src>
import functools

import jax
import jax.numpy as jnp
from jax.experimental import pallas as pl
from jax.experimental.pallas import tpu as pltpu

_EPS = 1e-5      # nn.BatchNorm1d default eps
_LANE = 128      # TPU lane width


# --------------------------------------------------------------------------------------
# small helpers
# --------------------------------------------------------------------------------------
def _round_up(n, m):
    return (n + m - 1) // m * m


def _pad2(a, rows, cols):
    return jnp.pad(a, ((0, rows - a.shape[0]), (0, cols - a.shape[1])))


def _vmem_capacity_bytes():
    try:
        info = pltpu.get_tpu_info()
        for attr in ("vmem_capacity_bytes", "vmem_bytes", "vmem_size_bytes"):
            v = getattr(info, attr, None)
            if v:
                return int(v)
    except Exception:
        pass
    return 64 * 2**20  # conservative default (v7x physical VMEM per TensorCore)


def _pick_tile(B, L, target_rows):
    """Sequences per tile: whole sequences only, so the k=3 conv taps are two in-tile
    pltpu.rolls + position masks and never need halo DMAs.  nb divides B and nb*L is a
    multiple of 8 sublanes (BlockSpec rule for non-full second-minor block dims)."""
    nb_cap = max(1, min(B, target_rows // max(L, 1)))
    for nb in range(nb_cap, 0, -1):
        if B % nb == 0 and (nb * L) % 8 == 0:
            return nb
    return B  # single whole-batch tile (always a legal block)


def _rows_from_ncl(x_ref, nb):
    """(nb, C, L) NCL block -> (nb*L, C) channels-last rows, built in-kernel with nb
    small 2-D XLU transposes + one sublane concat (no wrapper transpose / HBM round trip)."""
    parts = [jnp.transpose(x_ref[i], (1, 0)) for i in range(nb)]
    return parts[0] if nb == 1 else jnp.concatenate(parts, axis=0)


def _conv1d_k3(x, l_idx, L, w_ref, b_ref):
    """PyTorch Conv1d(kernel_size=3, stride=1, padding=1) on channels-last rows.

    x:     (R, Cin) f32, whole sequences per tile; l_idx = position within sequence.
    w_ref: (3*Cin, Co) stacked taps [w[:,:,0].T ; w[:,:,1].T ; w[:,:,2].T]  (bf16 or f32)
    b_ref: (1, Co) f32
    Taps are cast to the matmul dtype BEFORE concatenation so the (R, 3*Cin) temp is
    bf16, not f32.  Single wide-K MXU matmul with f32 accumulation.
    (On v5e / large Cin three separate accumulating dots would avoid the temp entirely.)
    """
    R = x.shape[0]
    md = w_ref.dtype
    xm = jnp.where(l_idx > 0, pltpu.roll(x, shift=1, axis=0), 0.0)          # x[l-1]
    xp = jnp.where(l_idx < L - 1, pltpu.roll(x, shift=R - 1, axis=0), 0.0)  # x[l+1]
    cat = jnp.concatenate([xm.astype(md), x.astype(md), xp.astype(md)], axis=-1)
    return jnp.dot(cat, w_ref[...], preferred_element_type=jnp.float32) + b_ref[...]


def _tile_stats(h, inv_rows):
    """Per-tile mean and M2 (sum of squared deviations from the tile mean), f32."""
    m = jnp.sum(h, axis=0, keepdims=True) * inv_rows
    m2 = jnp.sum(jnp.square(h - m), axis=0, keepdims=True)
    return m, m2


# --------------------------------------------------------------------------------------
# pass 1: conv1 (+ projection-shortcut statistics)
# --------------------------------------------------------------------------------------
def _pass1_kernel(*refs, L, nb, inv_rows, has_proj):
    if has_proj:
        (x_ref, w1_ref, b1_ref, ws_ref, bs_ref,
         h1_ref, m1_ref, q1_ref, ms_ref, qs_ref) = refs
    else:
        x_ref, w1_ref, b1_ref, h1_ref, m1_ref, q1_ref = refs

    rows = nb * L
    x = _rows_from_ncl(x_ref, nb)                                   # (rows, Cin) f32
    l_idx = jax.lax.broadcasted_iota(jnp.int32, (rows, 1), 0) % L

    h1 = _conv1d_k3(x, l_idx, L, w1_ref, b1_ref)                    # (rows, Cop) f32
    h1_ref[...] = h1.astype(h1_ref.dtype)                           # bf16 store
    m, q = _tile_stats(h1, inv_rows)
    m1_ref[0] = m
    q1_ref[0] = q

    if has_proj:
        # Projection output is NOT written to HBM; only its BN statistics are needed
        # here.  It is recomputed from x in pass 3.
        s = jnp.dot(x.astype(ws_ref.dtype), ws_ref[...],
                    preferred_element_type=jnp.float32) + bs_ref[...]
        ms, qs = _tile_stats(s, inv_rows)
        ms_ref[0] = ms
        qs_ref[0] = qs


# --------------------------------------------------------------------------------------
# pass 2: bn1 + relu + conv2 + per-tile stats of conv2 output
# --------------------------------------------------------------------------------------
def _pass2_kernel(h1_ref, sc1_ref, sh1_ref, w2_ref, b2_ref,
                  h2_ref, m2_ref, q2_ref, *, L, nb, inv_rows):
    rows = nb * L
    a = jnp.maximum(h1_ref[...].astype(jnp.float32) * sc1_ref[...] + sh1_ref[...], 0.0)
    l_idx = jax.lax.broadcasted_iota(jnp.int32, (rows, 1), 0) % L

    h2 = _conv1d_k3(a, l_idx, L, w2_ref, b2_ref)                    # (rows, Cop) f32
    h2_ref[...] = h2.astype(h2_ref.dtype)                           # bf16 store
    m, q = _tile_stats(h2, inv_rows)
    m2_ref[0] = m
    q2_ref[0] = q


# --------------------------------------------------------------------------------------
# pass 3: bn2 + shortcut (recomputed projection-bn or identity) + add + relu, NCL output
# --------------------------------------------------------------------------------------
def _pass3_kernel(*refs, L, nb, Cout, has_proj):
    if has_proj:
        (h2_ref, x_ref, sc2_ref, sh2_ref, ws_ref, bs_ref,
         scs_ref, shs_ref, o_ref) = refs
    else:
        h2_ref, x_ref, sc2_ref, sh2_ref, o_ref = refs

    y = h2_ref[...].astype(jnp.float32) * sc2_ref[...] + sh2_ref[...]   # (rows, Cop)
    x = _rows_from_ncl(x_ref, nb)                                        # (rows, Cin) f32

    if has_proj:
        s = jnp.dot(x.astype(ws_ref.dtype), ws_ref[...],
                    preferred_element_type=jnp.float32) + bs_ref[...]
        y = jnp.maximum(y + (s * scs_ref[...] + shs_ref[...]), 0.0)[:, :Cout]
    else:
        y = jnp.maximum(y[:, :Cout] + x, 0.0)

    # write the NCL output block directly (per-sequence 2-D transposes, XLU slot)
    for i in range(nb):
        o_ref[i] = jnp.transpose(y[i * L:(i + 1) * L, :], (1, 0))        # (Cout, L)


# --------------------------------------------------------------------------------------
# wrapper
# --------------------------------------------------------------------------------------
def _combine_stats(mean_t, m2_t, tile_rows, total_rows):
    """Chan-style combination of per-tile (mean, M2) partials (all tiles equal size)."""
    mt = mean_t[:, 0, :]
    qt = m2_t[:, 0, :]
    mean = jnp.mean(mt, axis=0, keepdims=True)
    m2 = (jnp.sum(qt, axis=0, keepdims=True)
          + tile_rows * jnp.sum(jnp.square(mt - mean), axis=0, keepdims=True))
    return mean, m2 / total_rows


def _bn_affine(mean, var, gamma, beta):
    scale = gamma * jax.lax.rsqrt(var + _EPS)
    return scale, beta - mean * scale


def residual_block_forward(x_ncl, params, *, matmul_dtype=jnp.bfloat16,
                           act_dtype=jnp.bfloat16, max_rows_per_tile=None):
    """x_ncl: (B, C_in, L) float32 PyTorch NCL layout. Returns (B, C_out, L) float32.
    Training-mode BatchNorm (batch statistics)."""
    B, Cin, L = x_ncl.shape
    Cout = params["conv1.weight"].shape[0]
    has_proj = Cin != Cout
    Cop = _round_up(Cout, _LANE)
    BL = B * L

    x_ncl = x_ncl.astype(jnp.float32)

    def vec(v):  # (C,) -> (1, Cop) f32, zero-padded
        return _pad2(v.reshape(1, -1).astype(jnp.float32), 1, Cop)

    def conv3(w, cin):  # torch (Cout, Cin, 3) -> stacked (3*cin, Cop)
        taps = [_pad2(w[:, :, k].T.astype(jnp.float32), cin, Cop) for k in range(3)]
        return jnp.concatenate(taps, axis=0).astype(matmul_dtype)

    w1s = conv3(params["conv1.weight"], Cin)                       # (3*Cin, Cop)
    b1 = vec(params["conv1.bias"])
    g1, be1 = vec(params["bn1.weight"]), vec(params["bn1.bias"])
    w2s = conv3(params["conv2.weight"], Cop)                       # (3*Cop, Cop)
    b2 = vec(params["conv2.bias"])
    g2, be2 = vec(params["bn2.weight"]), vec(params["bn2.bias"])
    if has_proj:
        ws = _pad2(params["shortcut.0.weight"][:, :, 0].T.astype(jnp.float32),
                   Cin, Cop).astype(matmul_dtype)                  # (Cin, Cop)
        bs = vec(params["shortcut.0.bias"])
        gs, bes = vec(params["shortcut.1.weight"]), vec(params["shortcut.1.bias"])

    # ---- tile sizing from VMEM capacity, consistent with vmem_limit ----
    vmem = _vmem_capacity_bytes()
    vmem_limit = int(min(vmem * 3 // 4, 96 * 2**20))
    if max_rows_per_tile is None:
        per_row = 26 * Cop + 12 * Cin   # heaviest pass, bf16 intermediates, incl. dbuf
        max_rows_per_tile = max(L, (vmem_limit // 2) // per_row)
    nb = _pick_tile(B, L, max_rows_per_tile)
    tile_rows = nb * L
    num_tiles = B // nb
    inv_rows = 1.0 / float(tile_rows)

    act_bytes = jnp.dtype(act_dtype).itemsize
    mm_bytes = jnp.dtype(matmul_dtype).itemsize

    # ---- BlockSpecs: NCL x/output blocks, lane-dense channels-last activations ----
    x_spec = pl.BlockSpec((nb, Cin, L), lambda i: (i, 0, 0))
    act_spec = pl.BlockSpec((tile_rows, Cop), lambda i: (i, 0))
    stat_spec = pl.BlockSpec((1, 1, Cop), lambda i: (i, 0, 0))
    bcast_spec = pl.BlockSpec((1, Cop), lambda i: (0, 0))
    out_spec = pl.BlockSpec((nb, Cout, L), lambda i: (i, 0, 0))

    def full(a):
        n = a.ndim
        return pl.BlockSpec(a.shape, lambda i: (0,) * n)

    par = pltpu.CompilerParams(dimension_semantics=("parallel",),
                               vmem_limit_bytes=vmem_limit)

    act_sds = jax.ShapeDtypeStruct((BL, Cop), act_dtype)
    stat_sds = jax.ShapeDtypeStruct((num_tiles, 1, Cop), jnp.float32)

    # ---------------- pass 1: conv1 (+ projection stats) ----------------
    if has_proj:
        p1_in = (x_ncl, w1s, b1, ws, bs)
        p1_specs = [x_spec, full(w1s), full(b1), full(ws), full(bs)]
        p1_out_shape = (act_sds, stat_sds, stat_sds, stat_sds, stat_sds)
        p1_out_specs = (act_spec, stat_spec, stat_spec, stat_spec, stat_spec)
    else:
        p1_in = (x_ncl, w1s, b1)
        p1_specs = [x_spec, full(w1s), full(b1)]
        p1_out_shape = (act_sds, stat_sds, stat_sds)
        p1_out_specs = (act_spec, stat_spec, stat_spec)

    flops1 = 2 * BL * (3 * Cin) * Cop + (2 * BL * Cin * Cop if has_proj else 0)
    bytes1 = 4 * B * Cin * L + act_bytes * BL * Cop + mm_bytes * 4 * Cin * Cop
    res1 = pl.pallas_call(
        functools.partial(_pass1_kernel, L=L, nb=nb, inv_rows=inv_rows, has_proj=has_proj),
        grid=(num_tiles,), in_specs=p1_specs, out_specs=p1_out_specs,
        out_shape=p1_out_shape, compiler_params=par,
        cost_estimate=pl.CostEstimate(flops=flops1, transcendentals=0,
                                      bytes_accessed=bytes1),
    )(*p1_in)
    if has_proj:
        h1, m1_t, q1_t, ms_t, qs_t = res1
    else:
        h1, m1_t, q1_t = res1

    mean1, var1 = _combine_stats(m1_t, q1_t, tile_rows, BL)   # tiny (1, Cop) jnp ops
    sc1, sh1 = _bn_affine(mean1, var1, g1, be1)

    # ---------------- pass 2: bn1 + relu + conv2 + stats ----------------
    flops2 = 2 * BL * (3 * Cop) * Cop
    bytes2 = 2 * act_bytes * BL * Cop + mm_bytes * 3 * Cop * Cop
    h2, m2_t, q2_t = pl.pallas_call(
        functools.partial(_pass2_kernel, L=L, nb=nb, inv_rows=inv_rows),
        grid=(num_tiles,),
        in_specs=[act_spec, bcast_spec, bcast_spec, full(w2s), full(b2)],
        out_specs=(act_spec, stat_spec, stat_spec),
        out_shape=(act_sds, stat_sds, stat_sds),
        compiler_params=par,
        cost_estimate=pl.CostEstimate(flops=flops2, transcendentals=0,
                                      bytes_accessed=bytes2),
    )(h1, sc1, sh1, w2s, b2)

    mean2, var2 = _combine_stats(m2_t, q2_t, tile_rows, BL)
    sc2, sh2 = _bn_affine(mean2, var2, g2, be2)

    # ---------------- pass 3: bn2 + shortcut + add + relu, NCL output ----------------
    if has_proj:
        means, vars_ = _combine_stats(ms_t, qs_t, tile_rows, BL)
        scs, shs = _bn_affine(means, vars_, gs, bes)
        p3_in = (h2, x_ncl, sc2, sh2, ws, bs, scs, shs)
        p3_specs = [act_spec, x_spec, bcast_spec, bcast_spec, full(ws), full(bs),
                    bcast_spec, bcast_spec]
    else:
        p3_in = (h2, x_ncl, sc2, sh2)
        p3_specs = [act_spec, x_spec, bcast_spec, bcast_spec]

    flops3 = 6 * BL * Cop + (2 * BL * Cin * Cop if has_proj else 0)
    bytes3 = act_bytes * BL * Cop + 4 * B * Cin * L + 4 * B * Cout * L
    out = pl.pallas_call(
        functools.partial(_pass3_kernel, L=L, nb=nb, Cout=Cout, has_proj=has_proj),
        grid=(num_tiles,), in_specs=p3_specs, out_specs=out_spec,
        out_shape=jax.ShapeDtypeStruct((B, Cout, L), jnp.float32),
        compiler_params=par,
        cost_estimate=pl.CostEstimate(flops=flops3, transcendentals=0,
                                      bytes_accessed=bytes3),
    )(*p3_in)
    return out


# --------------------------------------------------------------------------------------
# reference + params
# --------------------------------------------------------------------------------------
def init_params(key, in_channels, out_channels, k=3):
    keys = jax.random.split(key, 12)
    p = {
        "conv1.weight": 0.2 * jax.random.normal(keys[0], (out_channels, in_channels, k), jnp.float32),
        "conv1.bias":   0.1 * jax.random.normal(keys[1], (out_channels,), jnp.float32),
        "bn1.weight":   1.0 + 0.1 * jax.random.normal(keys[2], (out_channels,), jnp.float32),
        "bn1.bias":     0.1 * jax.random.normal(keys[3], (out_channels,), jnp.float32),
        "conv2.weight": 0.2 * jax.random.normal(keys[4], (out_channels, out_channels, k), jnp.float32),
        "conv2.bias":   0.1 * jax.random.normal(keys[5], (out_channels,), jnp.float32),
        "bn2.weight":   1.0 + 0.1 * jax.random.normal(keys[6], (out_channels,), jnp.float32),
        "bn2.bias":     0.1 * jax.random.normal(keys[7], (out_channels,), jnp.float32),
    }
    if in_channels != out_channels:
        p["shortcut.0.weight"] = 0.2 * jax.random.normal(keys[8], (out_channels, in_channels, 1), jnp.float32)
        p["shortcut.0.bias"]   = 0.1 * jax.random.normal(keys[9], (out_channels,), jnp.float32)
        p["shortcut.1.weight"] = 1.0 + 0.1 * jax.random.normal(keys[10], (out_channels,), jnp.float32)
        p["shortcut.1.bias"]   = 0.1 * jax.random.normal(keys[11], (out_channels,), jnp.float32)
    return p


def reference_forward(x, p):
    # Pure-JAX reference mirroring the PyTorch forward (training-mode BatchNorm).
    def conv1d(x, w, b, pad):
        y = jax.lax.conv_general_dilated(x, w, (1,), [(pad, pad)],
                                         dimension_numbers=("NCH", "OIH", "NCH"))
        return y + b[None, :, None]

    def bn(x, g, be):
        m = jnp.mean(x, axis=(0, 2), keepdims=True)
        v = jnp.mean(jnp.square(x - m), axis=(0, 2), keepdims=True)
        return (x - m) / jnp.sqrt(v + _EPS) * g[None, :, None] + be[None, :, None]

    h = jax.nn.relu(bn(conv1d(x, p["conv1.weight"], p["conv1.bias"], 1),
                       p["bn1.weight"], p["bn1.bias"]))
    h = bn(conv1d(h, p["conv2.weight"], p["conv2.bias"], 1), p["bn2.weight"], p["bn2.bias"])
    if "shortcut.0.weight" in p:
        sc = bn(conv1d(x, p["shortcut.0.weight"], p["shortcut.0.bias"], 0),
                p["shortcut.1.weight"], p["shortcut.1.bias"])
    else:
        sc = x
    return jax.nn.relu(h + sc)


def _round_conv_weights_bf16(p):
    # Same bf16 weight rounding the kernel's default matmul path uses.
    q = lambda t: t.astype(jnp.bfloat16).astype(jnp.float32)
    return {k: (q(v) if k.endswith(".weight") and v.ndim == 3 else v) for k, v in p.items()}


# --------------------------------------------------------------------------------------
# self-test
# --------------------------------------------------------------------------------------
if __name__ == "__main__":
    key = jax.random.PRNGKey(0)
    kx1, kp1, kx2, kp2 = jax.random.split(key, 4)

    # --- test 1: projection shortcut (Cin != Cout), single tile ---
    B, Cin, Cout, L = 2, 4, 8, 16
    x = jax.random.normal(kx1, (B, Cin, L), jnp.float32)
    params = init_params(kp1, Cin, Cout)
    ref = reference_forward(x, params)

    # exact-math path (f32 matmuls + f32 intermediates): tight tolerance
    out_f32 = jax.block_until_ready(
        residual_block_forward(x, params, matmul_dtype=jnp.float32,
                               act_dtype=jnp.float32))
    assert out_f32.shape == (B, Cout, L)
    err = float(jnp.max(jnp.abs(out_f32 - ref)))
    assert err < 1e-4, f"f32 path max abs err {err}"

    # default perf path (bf16 weights + bf16 inter-pass activations, f32 stats/accum):
    # compare against the reference evaluated with bf16-rounded conv weights.
    out_bf = jax.block_until_ready(residual_block_forward(x, params))
    ref_bf = reference_forward(x, _round_conv_weights_bf16(params))
    err_bf = float(jnp.max(jnp.abs(out_bf - ref_bf)))
    assert err_bf < 1e-1, f"bf16 path max abs err {err_bf}"

    # --- test 2: identity shortcut (Cin == Cout), multi-tile grid (4 x 256-row tiles) ---
    B2, C2, L2 = 16, 8, 64
    x2 = jax.random.normal(kx2, (B2, C2, L2), jnp.float32)
    params2 = init_params(kp2, C2, C2)
    ref2 = reference_forward(x2, params2)
    out2 = jax.block_until_ready(
        residual_block_forward(x2, params2, matmul_dtype=jnp.float32,
                               act_dtype=jnp.float32, max_rows_per_tile=256))
    assert out2.shape == (B2, C2, L2)
    err2 = float(jnp.max(jnp.abs(out2 - ref2)))
    assert err2 < 1e-4, f"multi-tile f32 path max abs err {err2}"

    print("KERNEL_OK")
</pallas_src>

<mosaic_0001>
module attributes {stable_mosaic.version = 11 : i64} {
  func.func @_pass1_kernel(%arg0: i32, %arg1: memref<2x4x16xf32, #tpu.memory_space<vmem>>, %arg2: memref<12x128xf32, #tpu.memory_space<vmem>>, %arg3: memref<1x128xf32, #tpu.memory_space<vmem>>, %arg4: memref<4x128xf32, #tpu.memory_space<vmem>>, %arg5: memref<1x128xf32, #tpu.memory_space<vmem>>, %arg6: memref<32x128xf32, #tpu.memory_space<vmem>>, %arg7: memref<1x1x128xf32, #tpu.memory_space<vmem>>, %arg8: memref<1x1x128xf32, #tpu.memory_space<vmem>>, %arg9: memref<1x1x128xf32, #tpu.memory_space<vmem>>, %arg10: memref<1x1x128xf32, #tpu.memory_space<vmem>>) attributes {dimension_semantics = [#tpu.dimension_semantics<parallel>], iteration_bounds = array<i64: 1>, scalar_prefetch = 0 : i64, scratch_operands = 0 : i64, tpu.core_type = #tpu.core_type<tc>, window_params = [{transform_indices = @transform_0, window_bounds = array<i64: 2, 4, 16>}, {pipeline_mode = #tpu.pipeline_mode<synchronous>, transform_indices = @transform_1, window_bounds = array<i64: 12, 128>}, {pipeline_mode = #tpu.pipeline_mode<synchronous>, transform_indices = @transform_2, window_bounds = array<i64: 1, 128>}, {pipeline_mode = #tpu.pipeline_mode<synchronous>, transform_indices = @transform_3, window_bounds = array<i64: 4, 128>}, {pipeline_mode = #tpu.pipeline_mode<synchronous>, transform_indices = @transform_4, window_bounds = array<i64: 1, 128>}, {transform_indices = @transform_5, window_bounds = array<i64: 32, 128>}, {transform_indices = @transform_6, window_bounds = array<i64: 1, 1, 128>}, {transform_indices = @transform_7, window_bounds = array<i64: 1, 1, 128>}, {transform_indices = @transform_8, window_bounds = array<i64: 1, 1, 128>}, {transform_indices = @transform_9, window_bounds = array<i64: 1, 1, 128>}]} {
    %c0 = arith.constant 0 : index
    %c0_0 = arith.constant 0 : index
    %c0_1 = arith.constant 0 : index
    %0 = vector.load %arg1[%c0, %c0_0, %c0_1] : memref<2x4x16xf32, #tpu.memory_space<vmem>>, vector<1x4x16xf32>
    %1 = vector.shape_cast %0 : vector<1x4x16xf32> to vector<4x16xf32>
    %2 = tpu.transpose %1, [1, 0] : vector<4x16xf32> -> vector<16x4xf32>
    %c1 = arith.constant 1 : index
    %c0_2 = arith.constant 0 : index
    %c0_3 = arith.constant 0 : index
    %3 = vector.load %arg1[%c1, %c0_2, %c0_3] : memref<2x4x16xf32, #tpu.memory_space<vmem>>, vector<1x4x16xf32>
    %4 = vector.shape_cast %3 : vector<1x4x16xf32> to vector<4x16xf32>
    %5 = tpu.transpose %4, [1, 0] : vector<4x16xf32> -> vector<16x4xf32>
    %6 = tpu.concatenate %2, %5 in 0 : vector<16x4xf32>, vector<16x4xf32> -> vector<32x4xf32>
    %7 = tpu.iota {dimensions = array<i32: 0>} : vector<32x1xi32>
    %c16_i32 = arith.constant 16 : i32
    %c0_i32 = arith.constant 0 : i32
    %8 = arith.cmpi eq, %c16_i32, %c0_i32 : i32
    %c1_i32 = arith.constant 1 : i32
    %9 = arith.select %8, %c1_i32, %c16_i32 : i32
    %10 = vector.broadcast %9 : i32 to vector<32x1xi32>
    %11 = arith.remsi %7, %10 : vector<32x1xi32>
    %c0_i32_4 = arith.constant 0 : i32
    %12 = vector.broadcast %c0_i32_4 : i32 to vector<32x1xi32>
    %13 = arith.cmpi ne, %11, %12 : vector<32x1xi32>
    %c0_i32_5 = arith.constant 0 : i32
    %14 = vector.broadcast %c0_i32_5 : i32 to vector<32x1xi32>
    %15 = arith.cmpi slt, %11, %14 : vector<32x1xi32>
    %c0_i32_6 = arith.constant 0 : i32
    %16 = arith.cmpi slt, %9, %c0_i32_6 : i32
    %17 = vector.broadcast %16 : i1 to vector<32x1xi1>
    %18 = vector.broadcast %17 : vector<32x1xi1> to vector<32x1xi1>
    %19 = arith.xori %15, %18 : vector<32x1xi1>
    %20 = arith.andi %19, %13 : vector<32x1xi1>
    %21 = vector.broadcast %9 : i32 to vector<32x1xi32>
    %22 = arith.addi %11, %21 : vector<32x1xi32>
    %23 = arith.select %20, %22, %11 : vector<32x1xi1>, vector<32x1xi32>
    %c0_i32_7 = arith.constant 0 : i32
    %24 = vector.broadcast %c0_i32_7 : i32 to vector<32x1xi32>
    %25 = arith.cmpi sgt, %23, %24 : vector<32x1xi32>
    %c1_i32_8 = arith.constant 1 : i32
    %26 = tpu.dynamic_rotate %6 by %c1_i32_8 dim 0 : vector<32x4xf32>, i32 -> vector<32x4xf32>
    %cst = arith.constant 0.000000e+00 : f32
    %27 = vector.shape_cast %25 : vector<32x1xi1> to vector<32x1xi1>
    %28 = vector.broadcast %27 : vector<32x1xi1> to vector<32x4xi1>
    %29 = vector.broadcast %cst : f32 to vector<32x4xf32>
    %30 = arith.select %28, %26, %29 : vector<32x4xi1>, vector<32x4xf32>
    %c15_i32 = arith.constant 15 : i32
    %31 = vector.broadcast %c15_i32 : i32 to vector<32x1xi32>
    %32 = arith.cmpi slt, %23, %31 : vector<32x1xi32>
    %c31_i32 = arith.constant 31 : i32
    %33 = tpu.dynamic_rotate %6 by %c31_i32 dim 0 : vector<32x4xf32>, i32 -> vector<32x4xf32>
    %cst_9 = arith.constant 0.000000e+00 : f32
    %34 = vector.shape_cast %32 : vector<32x1xi1> to vector<32x1xi1>
    %35 = vector.broadcast %34 : vector<32x1xi1> to vector<32x4xi1>
    %36 = vector.broadcast %cst_9 : f32 to vector<32x4xf32>
    %37 = arith.select %35, %33, %36 : vector<32x4xi1>, vector<32x4xf32>
    %38 = tpu.concatenate %30, %6, %37 in 1 : vector<32x4xf32>, vector<32x4xf32>, vector<32x4xf32> -> vector<32x12xf32>
    %c0_10 = arith.constant 0 : index
    %c0_11 = arith.constant 0 : index
    %39 = vector.load %arg2[%c0_10, %c0_11] : memref<12x128xf32, #tpu.memory_space<vmem>>, vector<12x128xf32>
    %cst_12 = arith.constant dense<0.000000e+00> : vector<32x128xf32>
    %40 = tpu.matmul %38, %39, %cst_12 {dimension_numbers = #tpu.dot_dimension_numbers<[1], [0], [0], [1], [0, 0, 1, 1], [], []>} : vector<32x12xf32>, vector<12x128xf32>, vector<32x128xf32> -> vector<32x128xf32>
    %c0_13 = arith.constant 0 : index
    %c0_14 = arith.constant 0 : index
    %41 = vector.load %arg3[%c0_13, %c0_14] : memref<1x128xf32, #tpu.memory_space<vmem>>, vector<1x128xf32>
    %42 = vector.broadcast %41 : vector<1x128xf32> to vector<32x128xf32>
    %43 = arith.addf %40, %42 : vector<32x128xf32>
    %c0_15 = arith.constant 0 : index
    %c0_16 = arith.constant 0 : index
    %44 = vector.load %arg6[%c0_15, %c0_16] : memref<32x128xf32, #tpu.memory_space<vmem>>, vector<32x128xf32>
    tpu.vector_store %arg6[%c0_15, %c0_16], %43 {strides = array<i32>} : memref<32x128xf32, #tpu.memory_space<vmem>>, vector<32x128xf32>,
    %cst_17 = arith.constant dense<0.000000e+00> : vector<128xf32>
    %45 = vector.multi_reduction <add>, %43, %cst_17 [0] : vector<32x128xf32> to vector<128xf32>
    %46 = vector.shape_cast %45 : vector<128xf32> to vector<1x128xf32>
    %cst_18 = arith.constant 3.125000e-02 : f32
    %47 = vector.broadcast %cst_18 : f32 to vector<1x128xf32>
    %48 = arith.mulf %46, %47 : vector<1x128xf32>
    %49 = vector.broadcast %48 : vector<1x128xf32> to vector<32x128xf32>
    %50 = arith.subf %43, %49 : vector<32x128xf32>
    %51 = arith.mulf %50, %50 : vector<32x128xf32>
    %cst_19 = arith.constant dense<0.000000e+00> : vector<128xf32>
    %52 = vector.multi_reduction <add>, %51, %cst_19 [0] : vector<32x128xf32> to vector<128xf32>
    %53 = vector.shape_cast %52 : vector<128xf32> to vector<1x128xf32>
    %c0_20 = arith.constant 0 : index
    %c0_21 = arith.constant 0 : index
    %c0_22 = arith.constant 0 : index
    %54 = vector.load %arg7[%c0_20, %c0_21, %c0_22] : memref<1x1x128xf32, #tpu.memory_space<vmem>>, vector<1x1x128xf32>
    %55 = vector.shape_cast %54 : vector<1x1x128xf32> to vector<1x128xf32>
    %56 = vector.shape_cast %48 : vector<1x128xf32> to vector<1x1x128xf32>
    tpu.vector_store %arg7[%c0_20, %c0_21, %c0_22], %56 {strides = array<i32>} : memref<1x1x128xf32, #tpu.memory_space<vmem>>, vector<1x1x128xf32>,
    %c0_23 = arith.constant 0 : index
    %c0_24 = arith.constant 0 : index
    %c0_25 = arith.constant 0 : index
    %57 = vector.load %arg8[%c0_23, %c0_24, %c0_25] : memref<1x1x128xf32, #tpu.memory_space<vmem>>, vector<1x1x128xf32>
    %58 = vector.shape_cast %57 : vector<1x1x128xf32> to vector<1x128xf32>
    %59 = vector.shape_cast %53 : vector<1x128xf32> to vector<1x1x128xf32>
    tpu.vector_store %arg8[%c0_23, %c0_24, %c0_25], %59 {strides = array<i32>} : memref<1x1x128xf32, #tpu.memory_space<vmem>>, vector<1x1x128xf32>,
    %c0_26 = arith.constant 0 : index
    %c0_27 = arith.constant 0 : index
    %60 = vector.load %arg4[%c0_26, %c0_27] : memref<4x128xf32, #tpu.memory_space<vmem>>, vector<4x128xf32>
    %cst_28 = arith.constant dense<0.000000e+00> : vector<32x128xf32>
    %61 = tpu.matmul %6, %60, %cst_28 {dimension_numbers = #tpu.dot_dimension_numbers<[1], [0], [0], [1], [0, 0, 1, 1], [], []>} : vector<32x4xf32>, vector<4x128xf32>, vector<32x128xf32> -> vector<32x128xf32>
    %c0_29 = arith.constant 0 : index
    %c0_30 = arith.constant 0 : index
    %62 = vector.load %arg5[%c0_29, %c0_30] : memref<1x128xf32, #tpu.memory_space<vmem>>, vector<1x128xf32>
    %63 = vector.broadcast %62 : vector<1x128xf32> to vector<32x128xf32>
    %64 = arith.addf %61, %63 : vector<32x128xf32>
    %cst_31 = arith.constant dense<0.000000e+00> : vector<128xf32>
    %65 = vector.multi_reduction <add>, %64, %cst_31 [0] : vector<32x128xf32> to vector<128xf32>
    %66 = vector.shape_cast %65 : vector<128xf32> to vector<1x128xf32>
    %cst_32 = arith.constant 3.125000e-02 : f32
    %67 = vector.broadcast %cst_32 : f32 to vector<1x128xf32>
    %68 = arith.mulf %66, %67 : vector<1x128xf32>
    %69 = vector.broadcast %68 : vector<1x128xf32> to vector<32x128xf32>
    %70 = arith.subf %64, %69 : vector<32x128xf32>
    %71 = arith.mulf %70, %70 : vector<32x128xf32>
    %cst_33 = arith.constant dense<0.000000e+00> : vector<128xf32>
    %72 = vector.multi_reduction <add>, %71, %cst_33 [0] : vector<32x128xf32> to vector<128xf32>
    %73 = vector.shape_cast %72 : vector<128xf32> to vector<1x128xf32>
    %c0_34 = arith.constant 0 : index
    %c0_35 = arith.constant 0 : index
    %c0_36 = arith.constant 0 : index
    %74 = vector.load %arg9[%c0_34, %c0_35, %c0_36] : memref<1x1x128xf32, #tpu.memory_space<vmem>>, vector<1x1x128xf32>
    %75 = vector.shape_cast %74 : vector<1x1x128xf32> to vector<1x128xf32>
    %76 = vector.shape_cast %68 : vector<1x128xf32> to vector<1x1x128xf32>
    tpu.vector_store %arg9[%c0_34, %c0_35, %c0_36], %76 {strides = array<i32>} : memref<1x1x128xf32, #tpu.memory_space<vmem>>, vector<1x1x128xf32>,
    %c0_37 = arith.constant 0 : index
    %c0_38 = arith.constant 0 : index
    %c0_39 = arith.constant 0 : index
    %77 = vector.load %arg10[%c0_37, %c0_38, %c0_39] : memref<1x1x128xf32, #tpu.memory_space<vmem>>, vector<1x1x128xf32>
    %78 = vector.shape_cast %77 : vector<1x1x128xf32> to vector<1x128xf32>
    %79 = vector.shape_cast %73 : vector<1x128xf32> to vector<1x1x128xf32>
    tpu.vector_store %arg10[%c0_37, %c0_38, %c0_39], %79 {strides = array<i32>} : memref<1x1x128xf32, #tpu.memory_space<vmem>>, vector<1x1x128xf32>,
    return
  }
  func.func @transform_0(%arg0: i32) -> (i32, i32, i32) {
    %c0_i32 = arith.constant 0 : i32
    %c0_i32_0 = arith.constant 0 : i32
    %c0_i32_1 = arith.constant 0 : i32
    return %arg0, %c0_i32, %c0_i32_0 : i32, i32, i32
  }
  func.func @transform_1(%arg0: i32) -> (i32, i32) {
    %c0_i32 = arith.constant 0 : i32
    %c0_i32_0 = arith.constant 0 : i32
    %c0_i32_1 = arith.constant 0 : i32
    return %c0_i32, %c0_i32_0 : i32, i32
  }
  func.func @transform_2(%arg0: i32) -> (i32, i32) {
    %c0_i32 = arith.constant 0 : i32
    %c0_i32_0 = arith.constant 0 : i32
    %c0_i32_1 = arith.constant 0 : i32
    return %c0_i32, %c0_i32_0 : i32, i32
  }
  func.func @transform_3(%arg0: i32) -> (i32, i32) {
    %c0_i32 = arith.constant 0 : i32
    %c0_i32_0 = arith.constant 0 : i32
    %c0_i32_1 = arith.constant 0 : i32
    return %c0_i32, %c0_i32_0 : i32, i32
  }
  func.func @transform_4(%arg0: i32) -> (i32, i32) {
    %c0_i32 = arith.constant 0 : i32
    %c0_i32_0 = arith.constant 0 : i32
    %c0_i32_1 = arith.constant 0 : i32
    return %c0_i32, %c0_i32_0 : i32, i32
  }
  func.func @transform_5(%arg0: i32) -> (i32, i32) {
    %c0_i32 = arith.constant 0 : i32
    %c0_i32_0 = arith.constant 0 : i32
    return %arg0, %c0_i32 : i32, i32
  }
  func.func @transform_6(%arg0: i32) -> (i32, i32, i32) {
    %c0_i32 = arith.constant 0 : i32
    %c0_i32_0 = arith.constant 0 : i32
    %c0_i32_1 = arith.constant 0 : i32
    return %arg0, %c0_i32, %c0_i32_0 : i32, i32, i32
  }
  func.func @transform_7(%arg0: i32) -> (i32, i32, i32) {
    %c0_i32 = arith.constant 0 : i32
    %c0_i32_0 = arith.constant 0 : i32
    %c0_i32_1 = arith.constant 0 : i32
    return %arg0, %c0_i32, %c0_i32_0 : i32, i32, i32
  }
  func.func @transform_8(%arg0: i32) -> (i32, i32, i32) {
    %c0_i32 = arith.constant 0 : i32
    %c0_i32_0 = arith.constant 0 : i32
    %c0_i32_1 = arith.constant 0 : i32
    return %arg0, %c0_i32, %c0_i32_0 : i32, i32, i32
  }
  func.func @transform_9(%arg0: i32) -> (i32, i32, i32) {
    %c0_i32 = arith.constant 0 : i32
    %c0_i32_0 = arith.constant 0 : i32
    %c0_i32_1 = arith.constant 0 : i32
    return %arg0, %c0_i32, %c0_i32_0 : i32, i32, i32
  }
}

</mosaic_0001>

<llo_original>
// kernel: tpu_custom_call.1
$region0: #{tpu_custom_call.1}
  #allocation0 [shape = 'u32[]', space=smem, size = 0x4, offset = 0x4, fixed_abs, tag = 'smem constant byte address 0x4 - core index']
  #allocation1 [shape = 'u32[144,128]{1,0:T(1,128)}', space=vmem, size = 0x12000, scoped, tag = 'internal scratch']
  %s0 = inlined_call_operand.hbm [shape: f32[2,4,16], index: 0, kind: input, shape index: {}]
  %s1 = inlined_call_operand.hbm [shape: f32[12,128], index: 1, kind: input, shape index: {}]
  %s2 = inlined_call_operand.vmem [shape: f32[1,128], index: 2, kind: input, shape index: {}]
  %s3 = inlined_call_operand.vmem [shape: f32[4,128], index: 3, kind: input, shape index: {}]
  %s4 = inlined_call_operand.vmem [shape: f32[1,128], index: 4, kind: input, shape index: {}]
  %s5 = inlined_call_operand.hbm [shape: f32[32,128], index: 5, kind: output, shape index: {0}]
  %s6 = inlined_call_operand.hbm [shape: f32[1,1,128], index: 6, kind: output, shape index: {1}]
  %s7 = inlined_call_operand.hbm [shape: f32[1,1,128], index: 7, kind: output, shape index: {2}]
  %s8 = inlined_call_operand.hbm [shape: f32[1,1,128], index: 8, kind: output, shape index: {3}]
  %s9 = inlined_call_operand.hbm [shape: f32[1,1,128], index: 9, kind: output, shape index: {4}]
  %10 = xla_tuple %s5, %s6, %s7, %s8, %s9
  %s11 = sld [smem:[#allocation0]]
  $region70: #{tpu_custom_call.1} parent=0
    _
  %s13 = ssub.s32 1, %s11
  %s14 = scalar_select 0, %s13, %s11
  $region1: #{tpu_custom_call.1} parent=0
    #allocation2 [shape = 'u8[4096]{0}', space=vmem, size = 0x1000, scoped, tag = 'input window, operand 0, single buffered']
    #allocation3 [shape = 's32[1]{0}', space=sflag, size = 0x4, scoped, tag = 'scoped memory for tpu_custom_call.1']
    #allocation4 [shape = 's32[1]{0}', space=sflag, size = 0x4, scoped, tag = 'scoped memory for tpu_custom_call.1']
    #allocation5 [shape = 'u8[8192]{0}', space=vmem, size = 0x2000, scoped, tag = 'input window, operand 1, single buffered']
    #allocation6 [shape = 's32[1]{0}', space=sflag, size = 0x4, scoped, tag = 'scoped memory for tpu_custom_call.1']
    #allocation7 [shape = 'u8[16384]{0}', space=vmem, size = 0x4000, scoped, tag = 'output window, operand 0, single buffered']
    #allocation8 [shape = 'u8[512]{0}', space=vmem, size = 0x400, scoped, tag = 'output window, operand 1, single buffered']
    #allocation9 [shape = 's32[1]{0}', space=sflag, size = 0x4, scoped, tag = 'scoped memory for tpu_custom_call.1']
    #allocation10 [shape = 'u8[512]{0}', space=vmem, size = 0x400, scoped, tag = 'output window, operand 2, single buffered']
    #allocation11 [shape = 'u8[512]{0}', space=vmem, size = 0x400, scoped, tag = 'output window, operand 3, single buffered']
    #allocation12 [shape = 's32[1]{0}', space=sflag, size = 0x4, scoped, tag = 'scoped memory for tpu_custom_call.1']
    #allocation13 [shape = 'u8[512]{0}', space=vmem, size = 0x400, scoped, tag = 'output window, operand 4, single buffered']
    %15 = vsyncpa [#allocation3], 0
    %16 = vsyncpa [#allocation6], 0
    %17 = vsyncpa [#allocation4], 0
    %18 = vsyncpa [#allocation9], 0
    %19 = vsyncpa [#allocation12], 0
    // Predicated region
    $region2: #{tpu_custom_call.1} parent=1 // pred_check
      _
    $region3: #{tpu_custom_call.1} parent=1 // pred_check_branch
      %21 = sbr.rel (0) target = $region5
    $region4: #{tpu_custom_call.1} parent=1 // pred_region
      %s23 = ssub.s32 128, 128
      %24 = vsyncadd [#allocation3], %s23
      %s25 = sshll.u32 [#allocation2], 4
      %s26 = int_to_ptr.vmem [resolvable:$true] %s25
      %31 = dma.hbm_to_vmem [thread:$0]  %s0, 128, %s26, [#allocation3], 64, 64, 4
    $region5: #{tpu_custom_call.1} parent=1 // pred_fallthru
      _
    // Predicated region
    $region6: #{tpu_custom_call.1} parent=1 // pred_check
      _
    $region7: #{tpu_custom_call.1} parent=1 // pred_check_branch
      %33 = sbr.rel (0) target = $region9
    $region8: #{tpu_custom_call.1} parent=1 // pred_region
      %s35 = ssub.s32 256, 256
      %36 = vsyncadd [#allocation6], %s35
      %s37 = sshll.u32 [#allocation5], 4
      %s38 = int_to_ptr.vmem [resolvable:$true] %s37
      %43 = dma.hbm_to_vmem [thread:$0]  %s1, 256, %s38, [#allocation6], 128, 128, 8
    $region9: #{tpu_custom_call.1} parent=1 // pred_fallthru
      _
    // Predicated region
    $region10: #{tpu_custom_call.1} parent=1 // pred_check
      _
    $region11: #{tpu_custom_call.1} parent=1 // pred_check_branch
      %45 = sbr.rel (0) target = $region13
    $region12: #{tpu_custom_call.1} parent=1 // pred_region
      _
    $region13: #{tpu_custom_call.1} parent=1 // pred_fallthru
      _
    // Predicated region
    $region14: #{tpu_custom_call.1} parent=1 // pred_check
      _
    $region15: #{tpu_custom_call.1} parent=1 // pred_check_branch
      %47 = sbr.rel (0) target = $region17
    $region16: #{tpu_custom_call.1} parent=1 // pred_region
      _
    $region17: #{tpu_custom_call.1} parent=1 // pred_fallthru
      _
    // Predicated region
    $region18: #{tpu_custom_call.1} parent=1 // pred_check
      _
    $region19: #{tpu_custom_call.1} parent=1 // pred_check_branch
      %49 = sbr.rel (0) target = $region21
    $region20: #{tpu_custom_call.1} parent=1 // pred_region
      _
    $region21: #{tpu_custom_call.1} parent=1 // pred_fallthru
      _
    // Predicated region
    $region22: #{tpu_custom_call.1} parent=1 // pred_check
      _
    $region23: #{tpu_custom_call.1} parent=1 // pred_check_branch
      %51 = sbr.rel (0) target = $region25
    $region24: #{tpu_custom_call.1} parent=1 // pred_region
      %52 = dma.done [#allocation3], 128
    $region25: #{tpu_custom_call.1} parent=1 // pred_fallthru
      _
    // Predicated region
    $region26: #{tpu_custom_call.1} parent=1 // pred_check
      _
    $region27: #{tpu_custom_call.1} parent=1 // pred_check_branch
      %54 = sbr.rel (0) target = $region29
    $region28: #{tpu_custom_call.1} parent=1 // pred_region
      %55 = dma.done [#allocation6], 256
    $region29: #{tpu_custom_call.1} parent=1 // pred_fallthru
      _
    %v56 = vld [vmem:[#allocation2] sm:$0xf]
    %57 = vxpose.xlu0.b32.start [1/16] %v56, 128
    %58 = vxpose.xlu0.b32.cont [2/16] 0.0, 128
    %59 = vxpose.xlu0.b32.cont [3/16] 0.0, 128
    %60 = vxpose.xlu0.b32.cont [4/16] 0.0, 128
    %61 = vxpose.xlu0.b32.cont [5/16] 0.0, 128
    %62 = vxpose.xlu0.b32.cont [6/16] 0.0, 128
    %63 = vxpose.xlu0.b32.cont [7/16] 0.0, 128
    %64 = vxpose.xlu0.b32.cont [8/16] 0.0, 128
    %65 = vxpose.xlu0.b32.cont [9/16] 0.0, 128
    %66 = vxpose.xlu0.b32.cont [10/16] 0.0, 128
    %67 = vxpose.xlu0.b32.cont [11/16] 0.0, 128
    %68 = vxpose.xlu0.b32.cont [12/16] 0.0, 128
    %69 = vxpose.xlu0.b32.cont [13/16] 0.0, 128
    %70 = vxpose.xlu0.b32.cont [14/16] 0.0, 128
    %71 = vxpose.xlu0.b32.cont [15/16] 0.0, 128
    %72 = vxpose.xlu0.b32.end [16/16] 0.0, 128
    %v73 = vpop.trf.xlu0
    %v74 = vpop.trf.xlu0
    %v75 = vpop.trf.xlu0
    %v76 = vpop.trf.xlu0
    %v77 = vpop.trf.xlu0
    %v78 = vpop.trf.xlu0
    %v79 = vpop.trf.xlu0
    %v80 = vpop.trf.xlu0
    %v81 = vpop.trf.xlu0
    %v82 = vpop.trf.xlu0
    %v83 = vpop.trf.xlu0
    %v84 = vpop.trf.xlu0
    %v85 = vpop.trf.xlu0
    %v86 = vpop.trf.xlu0
    %v87 = vpop.trf.xlu0
    %v88 = vpop.trf.xlu0
    %s89 = scalar_lea.vmem [#allocation2], 4
    %v90 = vld [vmem:[%s89] sm:$0xf]
    %91 = vxpose.xlu0.b32.start [1/16] %v90, 128
    %92 = vxpose.xlu0.b32.cont [2/16] 0.0, 128
    %93 = vxpose.xlu0.b32.cont [3/16] 0.0, 128
    %94 = vxpose.xlu0.b32.cont [4/16] 0.0, 128
    %95 = vxpose.xlu0.b32.cont [5/16] 0.0, 128
    %96 = vxpose.xlu0.b32.cont [6/16] 0.0, 128
    %97 = vxpose.xlu0.b32.cont [7/16] 0.0, 128
    %98 = vxpose.xlu0.b32.cont [8/16] 0.0, 128
    %99 = vxpose.xlu0.b32.cont [9/16] 0.0, 128
    %100 = vxpose.xlu0.b32.cont [10/16] 0.0, 128
    %101 = vxpose.xlu0.b32.cont [11/16] 0.0, 128
    %102 = vxpose.xlu0.b32.cont [12/16] 0.0, 128
    %103 = vxpose.xlu0.b32.cont [13/16] 0.0, 128
    %104 = vxpose.xlu0.b32.cont [14/16] 0.0, 128
    %105 = vxpose.xlu0.b32.cont [15/16] 0.0, 128
    %106 = vxpose.xlu0.b32.end [16/16] 0.0, 128
    %v107 = vpop.trf.xlu0
    %v108 = vpop.trf.xlu0
    %v109 = vpop.trf.xlu0
    %v110 = vpop.trf.xlu0
    %v111 = vpop.trf.xlu0
    %v112 = vpop.trf.xlu0
    %v113 = vpop.trf.xlu0
    %v114 = vpop.trf.xlu0
    %v115 = vpop.trf.xlu0
    %v116 = vpop.trf.xlu0
    %v117 = vpop.trf.xlu0
    %v118 = vpop.trf.xlu0
    %v119 = vpop.trf.xlu0
    %v120 = vpop.trf.xlu0
    %v121 = vpop.trf.xlu0
    %v122 = vpop.trf.xlu0
    %v123 = vlaneseq
    %v124 = vshrl.u32 %v123, 7
    %v125 = vadd.s32 %v124, 8
    %v126 = vadd.s32 %v124, 16
    %v127 = vadd.s32 %v124, 24
    %vm128 = vcmp.lt.s32.totalorder %v124, 0
    %v129 = vsub.s32 0, %v124
    %v130 = vsel %vm128, %v129, %v124
    %v131 = vshrl.u32 %v130, 4
    %v132 = vand.u32 %v130, 15
    %v133 = vsub.s32 0, %v132
    %v134 = vsel %vm128, %v133, %v132
    %vm135 = vcmp.lt.s32.totalorder %v125, 0
    %v136 = vsub.s32 0, %v125
    %v137 = vsel %vm135, %v136, %v125
    %v138 = vshrl.u32 %v137, 4
    %v139 = vand.u32 %v137, 15
    %v140 = vsub.s32 0, %v139
    %v141 = vsel %vm135, %v140, %v139
    %vm142 = vcmp.lt.s32.totalorder %v126, 0
    %v143 = vsub.s32 0, %v126
    %v144 = vsel %vm142, %v143, %v126
    %v145 = vshrl.u32 %v144, 4
    %v146 = vand.u32 %v144, 15
    %v147 = vsub.s32 0, %v146
    %v148 = vsel %vm142, %v147, %v146
    %vm149 = vcmp.lt.s32.totalorder %v127, 0
    %v150 = vsub.s32 0, %v127
    %v151 = vsel %vm149, %v150, %v127
    %v152 = vshrl.u32 %v151, 4
    %v153 = vand.u32 %v151, 15
    %v154 = vsub.s32 0, %v153
    %v155 = vsel %vm149, %v154, %v153
    %vm156 = vcmp.ne.s32.totalorder %v134, 0
    %vm157 = vcmp.ne.s32.totalorder %v141, 0
    %vm158 = vcmp.ne.s32.totalorder %v148, 0
    %vm159 = vcmp.ne.s32.totalorder %v155, 0
    %vm160 = vcmp.lt.s32.totalorder %v134, 0
    %vm161 = vcmp.lt.s32.totalorder %v141, 0
    %vm162 = vcmp.lt.s32.totalorder %v148, 0
    %vm163 = vcmp.lt.s32.totalorder %v155, 0
    %vm164 = vmand %vm160, %vm156
    %vm165 = vmand %vm161, %vm157
    %vm166 = vmand %vm162, %vm158
    %vm167 = vmand %vm163, %vm159
    %v168 = vadd.s32 %v134, 16
    %v169 = vadd.s32 %v141, 16
    %v170 = vadd.s32 %v148, 16
    %v171 = vadd.s32 %v155, 16
    %v172 = vsel %vm164, %v168, %v134
    %v173 = vsel %vm165, %v169, %v141
    %v174 = vsel %vm166, %v170, %v148
    %v175 = vsel %vm167, %v171, %v155
    %vm176 = vcmp.gt.s32.totalorder %v172, 0
    %vm177 = vcmp.gt.s32.totalorder %v173, 0
    %vm178 = vcmp.gt.s32.totalorder %v174, 0
    %vm179 = vcmp.gt.s32.totalorder %v175, 0
    %v180 = vrot.slane %v73, 7
    %v181 = vrot.slane %v74, 7
    %v182 = vrot.slane %v107, 7
    %v183 = vrot.slane %v108, 7
    %vm184 = vcmp.lt.s32.totalorder %v124, 1
    %v185 = vsel %vm184, %v182, %v183
    %v186 = vsel %vm184, %v181, %v182
    %v187 = vsel %vm184, %v180, %v181
    %v188 = vsel %vm184, %v183, %v180
    %v189 = vsel %vm176, 1, 0
    %v190 = vsel %vm177, 1, 0
    %v191 = vsel %vm178, 1, 0
    %v192 = vsel %vm179, 1, 0
    %vm193 = vcmp.eq.s32.totalorder %v189, 1
    %vm194 = vcmp.eq.s32.totalorder %v190, 1
    %vm195 = vcmp.eq.s32.totalorder %v191, 1
    %vm196 = vcmp.eq.s32.totalorder %v192, 1
    %v197 = vsel %vm193, %v188, 0.0
    %v198 = vsel %vm194, %v187, 0.0
    %v199 = vsel %vm195, %v186, 0.0
    %v200 = vsel %vm196, %v185, 0.0
    %vm201 = vcmp.lt.s32.totalorder %v172, 15
    %vm202 = vcmp.lt.s32.totalorder %v173, 15
    %vm203 = vcmp.lt.s32.totalorder %v174, 15
    %vm204 = vcmp.lt.s32.totalorder %v175, 15
    %v205 = vrot.slane %v73, 1
    %v206 = vrot.slane %v74, 1
    %v207 = vrot.slane %v107, 1
    %v208 = vrot.slane %v108, 1
    %vm209 = vcmp.lt.s32.totalorder %v124, 7
    %v210 = vsel %vm209, %v207, %v208
    %v211 = vsel %vm209, %v206, %v207
    %v212 = vsel %vm209, %v205, %v206
    %v213 = vsel %vm209, %v208, %v205
    %v214 = vsel %vm201, 1, 0
    %v215 = vsel %vm202, 1, 0
    %v216 = vsel %vm203, 1, 0
    %v217 = vsel %vm204, 1, 0
    %vm218 = vcmp.eq.s32.totalorder %v214, 1
    %vm219 = vcmp.eq.s32.totalorder %v215, 1
    %vm220 = vcmp.eq.s32.totalorder %v216, 1
    %vm221 = vcmp.eq.s32.totalorder %v217, 1
    %v222 = vsel %vm218, %v212, 0.0
    %v223 = vsel %vm219, %v211, 0.0
    %v224 = vsel %vm220, %v210, 0.0
    %v225 = vsel %vm221, %v213, 0.0
    %230 = vrot.lane.b32.xlu0 %v73, 4
    %v231 = vpop.permute.xlu0 %230
    %232 = vrot.lane.b32.xlu0 %v74, 4
    %v233 = vpop.permute.xlu0 %232
    %234 = vrot.lane.b32.xlu0 %v107, 4
    %v235 = vpop.permute.xlu0 %234
    %236 = vrot.lane.b32.xlu0 %v108, 4
    %v237 = vpop.permute.xlu0 %236
    %246 = vrot.lane.b32.xlu0 %v222, 8
    %v247 = vpop.permute.xlu0 %246
    %248 = vrot.lane.b32.xlu0 %v223, 8
    %v249 = vpop.permute.xlu0 %248
    %250 = vrot.lane.b32.xlu0 %v224, 8
    %v251 = vpop.permute.xlu0 %250
    %252 = vrot.lane.b32.xlu0 %v225, 8
    %v253 = vpop.permute.xlu0 %252
    %vm258 = vcmask 31744
    %v259 = vsel %vm258, %v197, %v231
    %v260 = vsel %vm258, %v198, %v233
    %v261 = vsel %vm258, %v199, %v235
    %v262 = vsel %vm258, %v200, %v237
    %vm263 = vcmask 64512
    %v264 = vsel %vm263, %v259, %v247
    %v265 = vsel %vm263, %v260, %v249
    %v266 = vsel %vm263, %v261, %v251
    %v267 = vsel %vm263, %v262, %v253
    %v268 = vld [vmem:[#allocation5] sm:$0xff]
    %v269 = vld [vmem:[#allocation5 + $0x8] sm:$0xf]
    %v270 = vld [vmem:[%s2] sm:$0x1]
    %v272 = vlaneseq
    %v273 = vshrl.u32 %v272, 7
    %v274 = vsub.s32 0, %v273
    %v275 = vrot.slane %v270, %v274
    %vm277 = vcmask 97280
    %v279 = vsel %vm277, %v264, 0
    %v282 = vsel %vm277, %v265, 0
    %v285 = vsel %vm277, %v266, 0
    %v288 = vsel %vm277, %v267, 0
    %vm290 = vcmask 1043456
    %v292 = vsel %vm290, %v269, 0
    %294 = vmatprep.subr.mxu0 0.0
    %295 = vmatpush1.msra.mxu0 0.0
    %296 = vmatprep.subr.mxu0 0.0
    %297 = vmatpush1.msra.mxu0 0.0
    %298 = vmatprep.subr.mxu0 0.0
    %299 = vmatpush1.msra.mxu0 0.0
    %300 = vmatprep.subr.mxu0 0.0
    %301 = vmatpush1.msra.mxu0 0.0
    %302 = vmatprep.subr.mxu0 0.0
    %303 = vmatpush1.msra.mxu0 0.0
    %304 = vmatprep.subr.mxu0 0.0
    %305 = vmatpush1.msra.mxu0 0.0
    %306 = vmatprep.subr.mxu0 0.0
    %307 = vmatpush1.msra.mxu0 0.0
    %308 = vmatprep.subr.mxu0 0.0
    %309 = vmatpush1.msra.mxu0 0.0
    %310 = vmatprep.subr.mxu0 0.0
    %311 = vmatpush1.msra.mxu0 0.0
    %312 = vmatprep.subr.mxu0 0.0
    %313 = vmatpush1.msra.mxu0 0.0
    %314 = vmatprep.subr.mxu0 0.0
    %315 = vmatpush1.msra.mxu0 0.0
    %316 = vmatprep.subr.mxu0 0.0
    %317 = vmatpush1.msra.mxu0 0.0
    %318 = vmatprep.subr.mxu0 0.0
    %319 = vmatpush1.msra.mxu0 0.0
    %320 = vmatprep.subr.mxu0 0.0
    %321 = vmatpush1.msra.mxu0 0.0
    %322 = vmatprep.subr.mxu0 0.0
    %323 = vmatpush1.msra.mxu0 %v292
    %324 = vmatprep.subr.mxu0 0.0
    %325 = vmatpush1.msra.mxu0 %v268
    %326 = vmatprep.subr.mxu0 0.0
    %327 = vmatpush2.msra.mxu0 0.0
    %328 = vmatprep.subr.mxu0 0.0
    %329 = vmatpush2.msra.mxu0 0.0
    %330 = vmatprep.subr.mxu0 0.0
    %331 = vmatpush2.msra.mxu0 0.0
    %332 = vmatprep.subr.mxu0 0.0
    %333 = vmatpush2.msra.mxu0 0.0
    %334 = vmatprep.subr.mxu0 0.0
    %335 = vmatpush2.msra.mxu0 0.0
    %336 = vmatprep.subr.mxu0 0.0
    %337 = vmatpush2.msra.mxu0 0.0
    %338 = vmatprep.subr.mxu0 0.0
    %339 = vmatpush2.msra.mxu0 0.0
    %340 = vmatprep.subr.mxu0 0.0
    %341 = vmatpush2.msra.mxu0 0.0
    %342 = vmatprep.subr.mxu0 0.0
    %343 = vmatpush2.msra.mxu0 0.0
    %344 = vmatprep.subr.mxu0 0.0
    %345 = vmatpush2.msra.mxu0 0.0
    %346 = vmatprep.subr.mxu0 0.0
    %347 = vmatpush2.msra.mxu0 0.0
    %348 = vmatprep.subr.mxu0 0.0
    %349 = vmatpush2.msra.mxu0 0.0
    %350 = vmatprep.subr.mxu0 0.0
    %351 = vmatpush2.msra.mxu0 0.0
    %352 = vmatprep.subr.mxu0 0.0
    %353 = vmatpush2.msra.mxu0 0.0
    %354 = vmatprep.subr.mxu0 0.0
    %355 = vmatpush2.msra.mxu0 0.0
    %356 = vmatprep.subr.mxu0 0.0
    %357 = vmatpush2.msra.mxu0 0.0
    %358 = vmatprep.mubr.f32.mxu0 0.0
    %359 = vmatmul.mubr.f32.gmra.mxu0 %v279
    %v360 = vpop.f32.mrf.mxu0
    %v361 = vadd.f32 %v275, %v360
    %v362 = vpop.f32.mrf.mxu0
    %363 = vmatprep.mubr.f32.mxu0 0.0
    %364 = vmatmul.mubr.f32.gmra.mxu0 %v282
    %v365 = vpop.f32.mrf.mxu0
    %v366 = vadd.f32 %v275, %v365
    %v367 = vpop.f32.mrf.mxu0
    %368 = vmatprep.mubr.f32.mxu0 0.0
    %369 = vmatmul.mubr.f32.gmra.mxu0 %v285
    %v370 = vpop.f32.mrf.mxu0
    %v371 = vadd.f32 %v275, %v370
    %v372 = vpop.f32.mrf.mxu0
    %373 = vmatprep.mubr.f32.mxu0 0.0
    %374 = vmatmul.mubr.f32.gmra.mxu0 %v288
    %v375 = vpop.f32.mrf.mxu0
    %v376 = vadd.f32 %v275, %v375
    %v377 = vpop.f32.mrf.mxu0
    %378 = vdwg.mxu0
    %379 = vst [vmem:[#allocation7] sm:$0xff] %v361
    %380 = vst [vmem:[#allocation7 + $0x8] sm:$0xff] %v366
    %381 = vst [vmem:[#allocation7 + $0x10] sm:$0xff] %v371
    %382 = vst [vmem:[#allocation7 + $0x18] sm:$0xff] %v376
    %v383 = vadd.f32 %v361, %v366
    %v384 = vadd.f32 %v383, %v371
    %v385 = vadd.f32 %v384, %v376
    %v386 = vrot.slane %v385, 4
    %v387 = vadd.f32 %v385, %v386
    %v388 = vrot.slane %v387, 2
    %v389 = vadd.f32 %v387, %v388
    %v390 = vrot.slane %v389, 1
    %v391 = vadd.f32 %v389, %v390
    %v392 = vmul.f32 %v391, 0.03125
    %v393 = vsub.f32 %v361, %v392
    %v394 = vsub.f32 %v366, %v392
    %v395 = vsub.f32 %v371, %v392
    %v396 = vsub.f32 %v376, %v392
    %v397 = vmul.f32 %v393, %v393
    %v398 = vmul.f32 %v394, %v394
    %v399 = vmul.f32 %v395, %v395
    %v400 = vmul.f32 %v396, %v396
    %v401 = vadd.f32 %v397, %v398
    %v402 = vadd.f32 %v401, %v399
    %v403 = vadd.f32 %v402, %v400
    %v404 = vrot.slane %v403, 4
    %v405 = vadd.f32 %v403, %v404
    %v406 = vrot.slane %v405, 2
    %v407 = vadd.f32 %v405, %v406
    %v408 = vrot.slane %v407, 1
    %v409 = vadd.f32 %v407, %v408
    %410 = vst [vmem:[#allocation8] sm:$0x1] %v392
    %411 = vst [vmem:[#allocation10] sm:$0x1] %v409
    %v412 = vld [vmem:[%s3] sm:$0xf]
    %v413 = vld [vmem:[%s4] sm:$0x1]
    %v415 = vlaneseq
    %v416 = vshrl.u32 %v415, 7
    %v417 = vsub.s32 0, %v416
    %v418 = vrot.slane %v413, %v417
    %v420 = vsel %vm258, %v73, 0
    %v422 = vsel %vm258, %v74, 0
    %v424 = vsel %vm258, %v107, 0
    %v426 = vsel %vm258, %v108, 0
    %v429 = vsel %vm290, %v412, 0
    %431 = vmatprep.subr.mxu0 0.0
    %432 = vmatpush1.msra.mxu0 0.0
    %433 = vmatprep.subr.mxu0 0.0
    %434 = vmatpush1.msra.mxu0 0.0
    %435 = vmatprep.subr.mxu0 0.0
    %436 = vmatpush1.msra.mxu0 0.0
    %437 = vmatprep.subr.mxu0 0.0
    %438 = vmatpush1.msra.mxu0 0.0
    %439 = vmatprep.subr.mxu0 0.0
    %440 = vmatpush1.msra.mxu0 0.0
    %441 = vmatprep.subr.mxu0 0.0
    %442 = vmatpush1.msra.mxu0 0.0
    %443 = vmatprep.subr.mxu0 0.0
    %444 = vmatpush1.msra.mxu0 0.0
    %445 = vmatprep.subr.mxu0 0.0
    %446 = vmatpush1.msra.mxu0 0.0
    %447 = vmatprep.subr.mxu0 0.0
    %448 = vmatpush1.msra.mxu0 0.0
    %449 = vmatprep.subr.mxu0 0.0
    %450 = vmatpush1.msra.mxu0 0.0
    %451 = vmatprep.subr.mxu0 0.0
    %452 = vmatpush1.msra.mxu0 0.0
    %453 = vmatprep.subr.mxu0 0.0
    %454 = vmatpush1.msra.mxu0 0.0
    %455 = vmatprep.subr.mxu0 0.0
    %456 = vmatpush1.msra.mxu0 0.0
    %457 = vmatprep.subr.mxu0 0.0
    %458 = vmatpush1.msra.mxu0 0.0
    %459 = vmatprep.subr.mxu0 0.0
    %460 = vmatpush1.msra.mxu0 0.0
    %461 = vmatprep.subr.mxu0 0.0
    %462 = vmatpush1.msra.mxu0 %v429
    %463 = vmatprep.subr.mxu0 0.0
    %464 = vmatpush2.msra.mxu0 0.0
    %465 = vmatprep.subr.mxu0 0.0
    %466 = vmatpush2.msra.mxu0 0.0
    %467 = vmatprep.subr.mxu0 0.0
    %468 = vmatpush2.msra.mxu0 0.0
    %469 = vmatprep.subr.mxu0 0.0
    %470 = vmatpush2.msra.mxu0 0.0
    %471 = vmatprep.subr.mxu0 0.0
    %472 = vmatpush2.msra.mxu0 0.0
    %473 = vmatprep.subr.mxu0 0.0
    %474 = vmatpush2.msra.mxu0 0.0
    %475 = vmatprep.subr.mxu0 0.0
    %476 = vmatpush2.msra.mxu0 0.0
    %477 = vmatprep.subr.mxu0 0.0
    %478 = vmatpush2.msra.mxu0 0.0
    %479 = vmatprep.subr.mxu0 0.0
    %480 = vmatpush2.msra.mxu0 0.0
    %481 = vmatprep.subr.mxu0 0.0
    %482 = vmatpush2.msra.mxu0 0.0
    %483 = vmatprep.subr.mxu0 0.0
    %484 = vmatpush2.msra.mxu0 0.0
    %485 = vmatprep.subr.mxu0 0.0
    %486 = vmatpush2.msra.mxu0 0.0
    %487 = vmatprep.subr.mxu0 0.0
    %488 = vmatpush2.msra.mxu0 0.0
    %489 = vmatprep.subr.mxu0 0.0
    %490 = vmatpush2.msra.mxu0 0.0
    %491 = vmatprep.subr.mxu0 0.0
    %492 = vmatpush2.msra.mxu0 0.0
    %493 = vmatprep.subr.mxu0 0.0
    %494 = vmatpush2.msra.mxu0 0.0
    %495 = vmatprep.mubr.f32.mxu0 0.0
    %496 = vmatmul.mubr.f32.gmra.mxu0 %v420
    %v497 = vpop.f32.mrf.mxu0
    %v498 = vadd.f32 %v418, %v497
    %v499 = vpop.f32.mrf.mxu0
    %500 = vmatprep.mubr.f32.mxu0 0.0
    %501 = vmatmul.mubr.f32.gmra.mxu0 %v422
    %v502 = vpop.f32.mrf.mxu0
    %v503 = vadd.f32 %v418, %v502
    %v504 = vpop.f32.mrf.mxu0
    %505 = vmatprep.mubr.f32.mxu0 0.0
    %506 = vmatmul.mubr.f32.gmra.mxu0 %v424
    %v507 = vpop.f32.mrf.mxu0
    %v508 = vadd.f32 %v418, %v507
    %v509 = vpop.f32.mrf.mxu0
    %510 = vmatprep.mubr.f32.mxu0 0.0
    %511 = vmatmul.mubr.f32.gmra.mxu0 %v426
    %v512 = vpop.f32.mrf.mxu0
    %v513 = vadd.f32 %v418, %v512
    %v514 = vpop.f32.mrf.mxu0
    %515 = vdwg.mxu0
    %v516 = vadd.f32 %v498, %v503
    %v517 = vadd.f32 %v516, %v508
    %v518 = vadd.f32 %v517, %v513
    %v519 = vrot.slane %v518, 4
    %v520 = vadd.f32 %v518, %v519
    %v521 = vrot.slane %v520, 2
    %v522 = vadd.f32 %v520, %v521
    %v523 = vrot.slane %v522, 1
    %v524 = vadd.f32 %v522, %v523
    %v525 = vmul.f32 %v524, 0.03125
    %v526 = vsub.f32 %v498, %v525
    %v527 = vsub.f32 %v503, %v525
    %v528 = vsub.f32 %v508, %v525
    %v529 = vsub.f32 %v513, %v525
    %v530 = vmul.f32 %v526, %v526
    %v531 = vmul.f32 %v527, %v527
    %v532 = vmul.f32 %v528, %v528
    %v533 = vmul.f32 %v529, %v529
    %v534 = vadd.f32 %v530, %v531
    %v535 = vadd.f32 %v534, %v532
    %v536 = vadd.f32 %v535, %v533
    %v537 = vrot.slane %v536, 4
    %v538 = vadd.f32 %v536, %v537
    %v539 = vrot.slane %v538, 2
    %v540 = vadd.f32 %v538, %v539
    %v541 = vrot.slane %v540, 1
    %v542 = vadd.f32 %v540, %v541
    %543 = vst [vmem:[#allocation11] sm:$0x1] %v525
    %544 = vst [vmem:[#allocation13] sm:$0x1] %v542
    // Predicated region
    $region30: #{tpu_custom_call.1} parent=1 // pred_check
      _
    $region31: #{tpu_custom_call.1} parent=1 // pred_check_branch
      %546 = sbr.rel (0) target = $region33
    $region32: #{tpu_custom_call.1} parent=1 // pred_region
      %s548 = ssub.s32 512, 512
      %549 = vsyncadd [#allocation4], %s548
      %s550 = sshll.u32 [#allocation7], 4
      %s551 = int_to_ptr.vmem [resolvable:$true] %s550
      %556 = dma.vmem_to_hbm [thread:$0]  %s551, 512, %s5, [#allocation4], 128, 128, 8
    $region33: #{tpu_custom_call.1} parent=1 // pred_fallthru
      _
    // Predicated region
    $region34: #{tpu_custom_call.1} parent=1 // pred_check
      _
    $region35: #{tpu_custom_call.1} parent=1 // pred_check_branch
      %558 = sbr.rel (0) target = $region37
    $region36: #{tpu_custom_call.1} parent=1 // pred_region
      %s560 = ssub.s32 16, 16
      %561 = vsyncadd [#allocation9], %s560
      %s563 = sshll.u32 [#allocation8], 4
      %s564 = int_to_ptr.vmem [resolvable:$true] %s563
      %566 = dma.vmem_to_hbm [thread:$0]  %s564, 16, %s6, [#allocation9]
    $region37: #{tpu_custom_call.1} parent=1 // pred_fallthru
      _
    // Predicated region
    $region38: #{tpu_custom_call.1} parent=1 // pred_check
      _
    $region39: #{tpu_custom_call.1} parent=1 // pred_check_branch
      %568 = sbr.rel (0) target = $region41
    $region40: #{tpu_custom_call.1} parent=1 // pred_region
      %s570 = ssub.s32 16, 16
      %571 = vsyncadd [#allocation9], %s570
      %s573 = sshll.u32 [#allocation10], 4
      %s574 = int_to_ptr.vmem [resolvable:$true] %s573
      %576 = dma.vmem_to_hbm [thread:$0]  %s574, 16, %s7, [#allocation9]
    $region41: #{tpu_custom_call.1} parent=1 // pred_fallthru
      _
    // Predicated region
    $region42: #{tpu_custom_call.1} parent=1 // pred_check
      _
    $region43: #{tpu_custom_call.1} parent=1 // pred_check_branch
      %578 = sbr.rel (0) target = $region45
    $region44: #{tpu_custom_call.1} parent=1 // pred_region
      %s580 = ssub.s32 16, 16
      %581 = vsyncadd [#allocation12], %s580
      %s583 = sshll.u32 [#allocation11], 4
      %s584 = int_to_ptr.vmem [resolvable:$true] %s583
      %586 = dma.vmem_to_hbm [thread:$0]  %s584, 16, %s8, [#allocation12]
    $region45: #{tpu_custom_call.1} parent=1 // pred_fallthru
      _
    // Predicated region
    $region46: #{tpu_custom_call.1} parent=1 // pred_check
      _
    $region47: #{tpu_custom_call.1} parent=1 // pred_check_branch
      %588 = sbr.rel (0) target = $region49
    $region48: #{tpu_custom_call.1} parent=1 // pred_region
      %s590 = ssub.s32 16, 16
      %591 = vsyncadd [#allocation12], %s590
      %s593 = sshll.u32 [#allocation13], 4
      %s594 = int_to_ptr.vmem [resolvable:$true] %s593
      %596 = dma.vmem_to_hbm [thread:$0]  %s594, 16, %s9, [#allocation12]
    $region49: #{tpu_custom_call.1} parent=1 // pred_fallthru
      _
    // Predicated region
    $region50: #{tpu_custom_call.1} parent=1 // pred_check
      _
    $region51: #{tpu_custom_call.1} parent=1 // pred_check_branch
      %598 = sbr.rel (0) target = $region53
    $region52: #{tpu_custom_call.1} parent=1 // pred_region
      %599 = dma.done [#allocation4], 512
    $region53: #{tpu_custom_call.1} parent=1 // pred_fallthru
      _
    // Predicated region
    $region54: #{tpu_custom_call.1} parent=1 // pred_check
      _
    $region55: #{tpu_custom_call.1} parent=1 // pred_check_branch
      %601 = sbr.rel (0) target = $region57
    $region56: #{tpu_custom_call.1} parent=1 // pred_region
      %602 = dma.done [#allocation9], 16
    $region57: #{tpu_custom_call.1} parent=1 // pred_fallthru
      _
    // Predicated region
    $region58: #{tpu_custom_call.1} parent=1 // pred_check
      _
    $region59: #{tpu_custom_call.1} parent=1 // pred_check_branch
      %604 = sbr.rel (0) target = $region61
    $region60: #{tpu_custom_call.1} parent=1 // pred_region
      %605 = dma.done [#allocation9], 16
    $region61: #{tpu_custom_call.1} parent=1 // pred_fallthru
      _
    // Predicated region
    $region62: #{tpu_custom_call.1} parent=1 // pred_check
      _
    $region63: #{tpu_custom_call.1} parent=1 // pred_check_branch
      %607 = sbr.rel (0) target = $region65
    $region64: #{tpu_custom_call.1} parent=1 // pred_region
      %608 = dma.done [#allocation12], 16
    $region65: #{tpu_custom_call.1} parent=1 // pred_fallthru
      _
    // Predicated region
    $region66: #{tpu_custom_call.1} parent=1 // pred_check
      _
    $region67: #{tpu_custom_call.1} parent=1 // pred_check_branch
      %610 = sbr.rel (0) target = $region69
    $region68: #{tpu_custom_call.1} parent=1 // pred_region
      %611 = dma.done [#allocation12], 16
    $region69: #{tpu_custom_call.1} parent=1 // pred_fallthru
      _
    %612 = vsyncpa [#allocation3], 1
    %613 = vsyncpa [#allocation6], 1
    %614 = vsyncpa [#allocation4], 1
    %615 = vsyncpa [#allocation9], 1
    %616 = vsyncpa [#allocation12], 1

</llo_original>
